<compile_context>
chip_gen: v5e
topology: v5e:2x2
jax: 0.10.0
libtpu: 0.0.40
codegen_flags: <defaults>
</compile_context>

<pallas_src>
import jax
import jax.numpy as jnp
from jax.experimental import pallas as pl
from jax.experimental.pallas import tpu as pltpu

SLICE_SIZE = 10   # `size = 10` in the PyTorch forward
ROW_TILE = 512    # rows per grid step; multiple of 8/16/32 -> dtype-safe


def slice_cat_kernel(x_ref, o_ref):
    # x_ref: (TN, F) in VMEM, o_ref: (TN, SLICE_SIZE + F) in VMEM
    body = x_ref[...]                        # one load of the input tile
    o_ref[:, SLICE_SIZE:] = body             # input -> output lanes [10, 10+F)
    o_ref[:, :SLICE_SIZE] = body[:, :SLICE_SIZE]   # head -> output lanes [0, 10)


def model_forward(x):
    n, f = x.shape
    out_f = SLICE_SIZE + f

    # Row tile: full array when small (block == full dim is always legal),
    # otherwise ROW_TILE (multiple of 8/16/32 sublanes). Last dims equal the
    # full array dims, satisfying the (8, 128) block rule.
    tn = n if n <= ROW_TILE else ROW_TILE
    grid = (pl.cdiv(n, tn),)

    return pl.pallas_call(
        slice_cat_kernel,
        out_shape=jax.ShapeDtypeStruct((n, out_f), x.dtype),
        grid=grid,
        in_specs=[
            pl.BlockSpec((tn, f), lambda i: (i, 0),
                         memory_space=pltpu.MemorySpace.VMEM),
        ],
        out_specs=pl.BlockSpec((tn, out_f), lambda i: (i, 0),
                               memory_space=pltpu.MemorySpace.VMEM),
        compiler_params=pltpu.CompilerParams(
            # Row tiles are independent -> shard across v7x's 2 TensorCores.
            dimension_semantics=("parallel",),
        ),
    )(x)


def _reference(x):
    # Plain-JAX mirror of the PyTorch semantics.
    return jnp.concatenate([x[:, :SLICE_SIZE], x], axis=1)


if __name__ == "__main__":
    key = jax.random.PRNGKey(0)
    k1, k2 = jax.random.split(key)

    # Same shape the module uses: (1, 100).
    x_small = jax.random.normal(k1, (1, 100), dtype=jnp.float32)
    out_small = jax.block_until_ready(model_forward(x_small))
    assert out_small.shape == (1, 110), out_small.shape
    assert jnp.array_equal(out_small, _reference(x_small)), "mismatch (1,100)"

    # Larger batch to exercise the row-tiled grid / pipelining path.
    x_big = jax.random.normal(k2, (1024, 100), dtype=jnp.float32)
    out_big = jax.block_until_ready(model_forward(x_big))
    assert out_big.shape == (1024, 110), out_big.shape
    assert jnp.array_equal(out_big, _reference(x_big)), "mismatch (1024,100)"

    print("KERNEL_OK")
</pallas_src>

<mosaic_0001>
module attributes {stable_mosaic.version = 11 : i64} {
  func.func @slice_cat_kernel(%arg0: i32, %arg1: memref<1x100xf32, #tpu.memory_space<vmem>>, %arg2: memref<1x110xf32, #tpu.memory_space<vmem>>) attributes {dimension_semantics = [#tpu.dimension_semantics<parallel>], iteration_bounds = array<i64: 1>, scalar_prefetch = 0 : i64, scratch_operands = 0 : i64, tpu.core_type = #tpu.core_type<tc>, window_params = [{transform_indices = @transform_0, window_bounds = array<i64: 1, 100>}, {transform_indices = @transform_1, window_bounds = array<i64: 1, 110>}]} {
    %c0 = arith.constant 0 : index
    %c0_0 = arith.constant 0 : index
    %0 = vector.load %arg1[%c0, %c0_0] : memref<1x100xf32, #tpu.memory_space<vmem>>, vector<1x100xf32>
    %c0_1 = arith.constant 0 : index
    %c10 = arith.constant 10 : index
    %1 = vector.load %arg2[%c0_1, %c10] : memref<1x110xf32, #tpu.memory_space<vmem>>, vector<1x100xf32>
    tpu.vector_store %arg2[%c0_1, %c10], %0 {strides = array<i32>} : memref<1x110xf32, #tpu.memory_space<vmem>>, vector<1x100xf32>,
    %2 = vector.extract_strided_slice %0 {offsets = [0, 0], sizes = [1, 10], strides = [1, 1]} : vector<1x100xf32> to vector<1x10xf32>
    %c0_2 = arith.constant 0 : index
    %c0_3 = arith.constant 0 : index
    %3 = vector.load %arg2[%c0_2, %c0_3] : memref<1x110xf32, #tpu.memory_space<vmem>>, vector<1x10xf32>
    tpu.vector_store %arg2[%c0_2, %c0_3], %2 {strides = array<i32>} : memref<1x110xf32, #tpu.memory_space<vmem>>, vector<1x10xf32>,
    return
  }
  func.func @transform_0(%arg0: i32) -> (i32, i32) {
    %c0_i32 = arith.constant 0 : i32
    %c0_i32_0 = arith.constant 0 : i32
    return %arg0, %c0_i32 : i32, i32
  }
  func.func @transform_1(%arg0: i32) -> (i32, i32) {
    %c0_i32 = arith.constant 0 : i32
    %c0_i32_0 = arith.constant 0 : i32
    return %arg0, %c0_i32 : i32, i32
  }
}

</mosaic_0001>

<llo_original>
// kernel: tpu_custom_call.1
$region0: #{tpu_custom_call.1}
  #allocation0 [shape = 'u32[]', space=smem, size = 0x4, offset = 0x4, fixed_abs, tag = 'smem constant byte address 0x4 - core index']
  #allocation1 [shape = 'u32[72,128]{1,0:T(1,128)}', space=vmem, size = 0x9000, scoped, tag = 'internal scratch']
  %s0 = inlined_call_operand.hbm [shape: f32[1,100], index: 0, kind: input, shape index: {}]
  %s1 = inlined_call_operand.hbm [shape: f32[1,110], index: 1, kind: output, shape index: {}]
  %s2 = sld [smem:[#allocation0]]
  $region18: #{tpu_custom_call.1} parent=0
    _
  %s4 = ssub.s32 1, %s2
  %s5 = scalar_select 0, %s4, %s2
  $region1: #{tpu_custom_call.1} parent=0
    #allocation2 [shape = 'u8[512]{0}', space=vmem, size = 0x400, scoped, tag = 'input window, operand 0, single buffered']
    #allocation3 [shape = 's32[1]{0}', space=sflag, size = 0x4, scoped, tag = 'scoped memory for tpu_custom_call.1']
    #allocation4 [shape = 's32[1]{0}', space=sflag, size = 0x4, scoped, tag = 'scoped memory for tpu_custom_call.1']
    #allocation5 [shape = 'u8[512]{0}', space=vmem, size = 0x400, scoped, tag = 'output window, operand 0, single buffered']
    %6 = vsyncpa [#allocation3], 0
    %7 = vsyncpa [#allocation4], 0
    // Predicated region
    $region2: #{tpu_custom_call.1} parent=1 // pred_check
      _
    $region3: #{tpu_custom_call.1} parent=1 // pred_check_branch
      %9 = sbr.rel (0) target = $region5
    $region4: #{tpu_custom_call.1} parent=1 // pred_region
      %11 = vsyncadd [#allocation3], 0
      %s13 = sshll.u32 %s0, 4
      %s14 = int_to_ptr.hbm [resolvable:$true] %s13
      %s15 = sshll.u32 [#allocation2], 4
      %s16 = int_to_ptr.vmem [resolvable:$true] %s15
      %18 = dma.hbm_to_vmem [thread:$0]  %s14, 16, %s16, [#allocation3]
    $region5: #{tpu_custom_call.1} parent=1 // pred_fallthru
      _
    // Predicated region
    $region6: #{tpu_custom_call.1} parent=1 // pred_check
      _
    $region7: #{tpu_custom_call.1} parent=1 // pred_check_branch
      %20 = sbr.rel (0) target = $region9
    $region8: #{tpu_custom_call.1} parent=1 // pred_region
      %22 = dma.done [#allocation3], 16
    $region9: #{tpu_custom_call.1} parent=1 // pred_fallthru
      _
    %v23 = vld [vmem:[#allocation2] sm:$0x1]
    %v25 = vperm.slane %v23, 0
    %26 = vrot.lane.b32.xlu0 %v25, 10
    %v27 = vpop.permute.xlu0 %26
    %vm29 = vcmask 893008
    %30 = vst.msk [vmem:[#allocation5] sm:$0x1] %vm29, %v27
    %vm31 = vcmask 73728
    %32 = vst.msk [vmem:[#allocation5] sm:$0x1] %vm31, %v23
    // Predicated region
    $region10: #{tpu_custom_call.1} parent=1 // pred_check
      _
    $region11: #{tpu_custom_call.1} parent=1 // pred_check_branch
      %34 = sbr.rel (0) target = $region13
    $region12: #{tpu_custom_call.1} parent=1 // pred_region
      %36 = vsyncadd [#allocation4], 0
      %s38 = sshll.u32 [#allocation5], 4
      %s39 = int_to_ptr.vmem [resolvable:$true] %s38
      %s40 = sshll.u32 %s1, 4
      %s41 = int_to_ptr.hbm [resolvable:$true] %s40
      %43 = dma.vmem_to_hbm [thread:$0]  %s39, 16, %s41, [#allocation4]
    $region13: #{tpu_custom_call.1} parent=1 // pred_fallthru
      _
    // Predicated region
    $region14: #{tpu_custom_call.1} parent=1 // pred_check
      _
    $region15: #{tpu_custom_call.1} parent=1 // pred_check_branch
      %45 = sbr.rel (0) target = $region17
    $region16: #{tpu_custom_call.1} parent=1 // pred_region
      %47 = dma.done [#allocation4], 16
    $region17: #{tpu_custom_call.1} parent=1 // pred_fallthru
      _
    %48 = vsyncpa [#allocation3], 1
    %49 = vsyncpa [#allocation4], 1

</llo_original>
